<compile_context>
chip_gen: v5e
topology: v5e:2x2
jax: 0.10.0
libtpu: 0.0.40
codegen_flags: <defaults>
</compile_context>

<pallas_src>
import functools
from typing import NamedTuple

import jax
import jax.numpy as jnp
from jax.experimental import pallas as pl
from jax.experimental.pallas import tpu as pltpu


def _round_up(v, m):
    return (v + m - 1) // m * m


def _vmem_capacity_bytes():
    try:
        return int(pltpu.get_tpu_info().vmem_capacity_bytes)
    except Exception:
        return 64 * 2 ** 20  # conservative default (v7x per-TC VMEM)


# ---------------------------------------------------------------------------
# Kernels
# ---------------------------------------------------------------------------

def _expert_kernel_single(x_ref, w1_ref, b1_ref, w2_ref, b2_ref, o_ref):
    """grid = (n_i,). Weight blocks are grid-invariant -> fetched once per call."""
    # linear1 on the MXU, f32 accumulation.
    h = jnp.dot(x_ref[...], w1_ref[...], preferred_element_type=jnp.float32)
    h = jax.nn.gelu(h + b1_ref[...])                      # f32 activation (VPU/EUP)
    # dropout1: identity in eval mode.
    acc = jnp.dot(h.astype(w2_ref.dtype), w2_ref[...],
                  preferred_element_type=jnp.float32)
    # dropout2: identity in eval mode.
    o_ref[...] = (acc + b2_ref[...]).astype(o_ref.dtype)


def _expert_kernel_multi(x_ref, w1_ref, b1_ref, w2_ref, b2_ref, o_ref, acc_ref):
    """grid = (n_i, n_j); j tiles dff (reduction axis, last, 'arbitrary')."""
    j = pl.program_id(1)

    @pl.when(j == 0)
    def _init():
        acc_ref[...] = jnp.zeros_like(acc_ref)

    h = jnp.dot(x_ref[...], w1_ref[...], preferred_element_type=jnp.float32)
    h = jax.nn.gelu(h + b1_ref[...])
    # dropout1: identity in eval mode.
    acc_ref[...] += jnp.dot(h.astype(w2_ref.dtype), w2_ref[...],
                            preferred_element_type=jnp.float32)

    @pl.when(j == pl.num_programs(1) - 1)
    def _finalize():
        # dropout2: identity in eval mode.
        o_ref[...] = (acc_ref[...] + b2_ref[...]).astype(o_ref.dtype)


# ---------------------------------------------------------------------------
# Planning (static tile / VMEM sizing, computed once per shape+dtype config)
# ---------------------------------------------------------------------------

class _Config(NamedTuple):
    tm: int
    tdff: int
    dmp: int
    dffp: int
    Mp: int
    n_i: int
    n_j: int
    compute_dtype: str
    out_dtype: str
    vmem_limit: int


def _plan(M, d_model, dff, compute_dtype, out_dtype, tm_max, tdff_max, vmem_cap):
    cbytes = jnp.dtype(compute_dtype).itemsize
    obytes = jnp.dtype(out_dtype).itemsize
    dmp = _round_up(d_model, 128)

    # Row tile: large MXU-friendly tile for big M; for small M split into >= 2
    # tiles so both v7x TensorCores get work on the "parallel" axis.
    if M >= 2 * tm_max:
        tm = tm_max
    elif M > 8:
        tm = min(_round_up((M + 1) // 2, 8), tm_max)
    else:
        tm = 8

    dffp_full = _round_up(dff, 128)
    tdff = dffp_full if tdff_max is None else min(_round_up(tdff_max, 128), dffp_full)

    budget = int(vmem_cap * 0.7)

    def need(tm_, tdff_, single_):
        w = 2 * 2 * dmp * tdff_ * cbytes           # w1 + w2 tiles, double-buffered
        io = 2 * tm_ * dmp * (cbytes + obytes)     # x + out tiles, double-buffered
        h = tm_ * tdff_ * (2 * 4 + cbytes)         # f32 h (+ gelu temp) + cast copy
        acc = 0 if single_ else tm_ * dmp * 4      # f32 accumulator scratch
        bias = 2 * (tdff_ + dmp) * 4
        return w + io + h + acc + bias

    # Shrink the dff tile until it fits the budget (single-step only when the
    # whole padded dff fits), then shrink the row tile if still over budget.
    while tdff > 128 and need(tm, tdff, tdff == dffp_full) > budget:
        tdff = max(128, _round_up(tdff // 2, 128))
    single = tdff == dffp_full
    while tm > 8 and need(tm, tdff, single) > budget:
        tm = max(8, _round_up(tm // 2, 8))

    dffp = _round_up(dff, tdff)
    Mp = _round_up(M, tm)
    n_i, n_j = Mp // tm, dffp // tdff
    vmem_limit = int(min(max(int(need(tm, tdff, single) * 1.25), 16 * 2 ** 20),
                         int(vmem_cap * 0.75)))
    return _Config(tm, tdff, dmp, dffp, Mp, n_i, n_j,
                   jnp.dtype(compute_dtype).name, jnp.dtype(out_dtype).name,
                   vmem_limit)


# ---------------------------------------------------------------------------
# Weight preparation (hoist the per-call pad/cast of the weights)
# ---------------------------------------------------------------------------

def prepare_expert_params(w1, b1, w2, b2, cfg):
    """Pad + cast the weights once; reuse the result across forward calls."""
    cdt = jnp.dtype(cfg.compute_dtype)
    d_model, dff = w1.shape
    w1p = jnp.pad(w1.astype(cdt), ((0, cfg.dmp - d_model), (0, cfg.dffp - dff)))
    b1p = jnp.pad(b1.astype(jnp.float32), (0, cfg.dffp - dff)).reshape(1, cfg.dffp)
    w2p = jnp.pad(w2.astype(cdt), ((0, cfg.dffp - dff), (0, cfg.dmp - d_model)))
    b2p = jnp.pad(b2.astype(jnp.float32), (0, cfg.dmp - d_model)).reshape(1, cfg.dmp)
    return w1p, b1p, w2p, b2p


# ---------------------------------------------------------------------------
# pallas_call wrapper
# ---------------------------------------------------------------------------

def _expert_call(xp, w1p, b1p, w2p, b2p, cfg):
    out_dtype = jnp.dtype(cfg.out_dtype)
    tm, dmp, tdff = cfg.tm, cfg.dmp, cfg.tdff
    weight_passes = 1 if cfg.n_j == 1 else cfg.n_i
    cost = pl.CostEstimate(
        flops=int(2 * cfg.Mp * dmp * cfg.dffp * 2),             # two matmuls
        transcendentals=int(cfg.Mp * cfg.dffp),                 # gelu
        bytes_accessed=int(xp.size * xp.dtype.itemsize
                           + weight_passes * (w1p.size + w2p.size) * w1p.dtype.itemsize
                           + (b1p.size + b2p.size) * 4
                           + cfg.Mp * dmp * out_dtype.itemsize),
    )

    if cfg.n_j == 1:
        # Weight-resident path: weight block indices are grid-invariant, the
        # full weight set is fetched from HBM exactly once per call.
        return pl.pallas_call(
            _expert_kernel_single,
            out_shape=jax.ShapeDtypeStruct((cfg.Mp, dmp), out_dtype),
            grid_spec=pltpu.PrefetchScalarGridSpec(
                num_scalar_prefetch=0,
                grid=(cfg.n_i,),
                in_specs=[
                    pl.BlockSpec((tm, dmp), lambda i: (i, 0)),      # x row tile
                    pl.BlockSpec((dmp, tdff), lambda i: (0, 0)),    # w1 (grid-invariant)
                    pl.BlockSpec((1, tdff), lambda i: (0, 0)),      # b1
                    pl.BlockSpec((tdff, dmp), lambda i: (0, 0)),    # w2 (grid-invariant)
                    pl.BlockSpec((1, dmp), lambda i: (0, 0)),       # b2
                ],
                out_specs=pl.BlockSpec((tm, dmp), lambda i: (i, 0)),
            ),
            compiler_params=pltpu.CompilerParams(
                dimension_semantics=("parallel",),
                vmem_limit_bytes=cfg.vmem_limit),
            cost_estimate=cost,
        )(xp, w1p, b1p, w2p, b2p)

    # Fallback: dff tiled as a reduction axis with an f32 VMEM accumulator.
    return pl.pallas_call(
        _expert_kernel_multi,
        out_shape=jax.ShapeDtypeStruct((cfg.Mp, dmp), out_dtype),
        grid_spec=pltpu.PrefetchScalarGridSpec(
            num_scalar_prefetch=0,
            grid=(cfg.n_i, cfg.n_j),
            in_specs=[
                pl.BlockSpec((tm, dmp), lambda i, j: (i, 0)),       # x row tile
                pl.BlockSpec((dmp, tdff), lambda i, j: (0, j)),     # w1 dff tile
                pl.BlockSpec((1, tdff), lambda i, j: (0, j)),       # b1 dff tile
                pl.BlockSpec((tdff, dmp), lambda i, j: (j, 0)),     # w2 dff tile
                pl.BlockSpec((1, dmp), lambda i, j: (0, 0)),        # b2 (grid-invariant)
            ],
            out_specs=pl.BlockSpec((tm, dmp), lambda i, j: (i, 0)),
            scratch_shapes=[pltpu.VMEM((tm, dmp), jnp.float32)],
        ),
        compiler_params=pltpu.CompilerParams(
            dimension_semantics=("parallel", "arbitrary"),
            vmem_limit_bytes=cfg.vmem_limit),
        cost_estimate=cost,
    )(xp, w1p, b1p, w2p, b2p)


@functools.partial(jax.jit, static_argnames=("cfg",))
def expert_apply(x, params, cfg):
    """x: [B, S, d_model], params: pre-padded/cast weights from prepare_expert_params."""
    B, S, d_model = x.shape
    M = B * S
    w1p, b1p, w2p, b2p = params
    xp = jnp.pad(x.reshape(M, d_model).astype(jnp.dtype(cfg.compute_dtype)),
                 ((0, cfg.Mp - M), (0, cfg.dmp - d_model)))
    out2d = _expert_call(xp, w1p, b1p, w2p, b2p, cfg)
    return out2d[:M, :d_model].reshape(B, S, d_model)


def expert_forward(x, w1, b1, w2, b2, *, compute_dtype=None, tm_max=512, tdff_max=None):
    """Convenience wrapper: plans tiling, prepares weights, applies the kernel."""
    B, S, d_model = x.shape
    dff = w1.shape[1]
    out_dtype = x.dtype
    if compute_dtype is None:
        # bf16 MXU operands + f32 accumulation is the intended fast path.
        compute_dtype = jnp.bfloat16 if x.dtype == jnp.float32 else x.dtype
    cfg = _plan(B * S, d_model, dff, compute_dtype, out_dtype,
                tm_max, tdff_max, _vmem_capacity_bytes())
    params = prepare_expert_params(w1, b1, w2, b2, cfg)
    return expert_apply(x, params, cfg)


# ---------------------------------------------------------------------------
# Reference + test
# ---------------------------------------------------------------------------

def _reference(x, w1, b1, w2, b2):
    xf = x.astype(jnp.float32)
    h = jax.nn.gelu(xf @ w1.astype(jnp.float32) + b1.astype(jnp.float32))
    return h @ w2.astype(jnp.float32) + b2.astype(jnp.float32)


if __name__ == "__main__":
    # Small, deterministic shapes consistent with the module's forward.
    batch, seq = 2, 8
    d_model, dim_feedforward = 32, 64
    dtype = jnp.float32

    key = jax.random.PRNGKey(0)
    kx, kw1, kb1, kw2, kb2, kw1b, kw2b = jax.random.split(key, 7)

    x = jax.random.normal(kx, (batch, seq, d_model), dtype=dtype)
    # nn.Linear-style init (uniform bounded by 1/sqrt(fan_in)); deterministic here.
    lim1 = 1.0 / (d_model ** 0.5)
    lim2 = 1.0 / (dim_feedforward ** 0.5)
    w1 = jax.random.uniform(kw1, (d_model, dim_feedforward), dtype, -lim1, lim1)
    b1 = jax.random.uniform(kb1, (dim_feedforward,), dtype, -lim1, lim1)
    w2 = jax.random.uniform(kw2, (dim_feedforward, d_model), dtype, -lim2, lim2)
    b2 = jax.random.uniform(kb2, (d_model,), dtype, -lim2, lim2)

    ref = _reference(x, w1, b1, w2, b2)

    # f32 operands (tight check) -> weight-resident single-step kernel.
    out_f32 = jax.block_until_ready(
        expert_forward(x, w1, b1, w2, b2, compute_dtype=jnp.float32))
    assert out_f32.shape == (batch, seq, d_model)
    assert jnp.allclose(out_f32, ref, atol=1e-3, rtol=1e-3), "f32 mismatch vs reference"

    # Default fast path: bf16 MXU operands, f32 accumulation / bias / activation.
    out_bf16 = jax.block_until_ready(expert_forward(x, w1, b1, w2, b2))
    assert out_bf16.shape == (batch, seq, d_model)
    assert jnp.allclose(out_bf16, ref, atol=1e-1, rtol=5e-2), "bf16 mismatch vs reference"

    # Force the dff-tiled reduction (multi-step) kernel at small shapes by
    # capping tdff below the padded dff of a second (dff=256) weight set.
    dff_b = 256
    lim2b = 1.0 / (dff_b ** 0.5)
    w1b = jax.random.uniform(kw1b, (d_model, dff_b), dtype, -lim1, lim1)
    b1b = jax.random.uniform(kb1, (dff_b,), dtype, -lim1, lim1)
    w2b = jax.random.uniform(kw2b, (dff_b, d_model), dtype, -lim2b, lim2b)
    b2b = jax.random.uniform(kb2, (d_model,), dtype, -lim2b, lim2b)
    ref_b = _reference(x, w1b, b1b, w2b, b2b)
    out_multi = jax.block_until_ready(
        expert_forward(x, w1b, b1b, w2b, b2b, compute_dtype=jnp.float32, tdff_max=128))
    assert out_multi.shape == (batch, seq, d_model)
    assert jnp.allclose(out_multi, ref_b, atol=2e-3, rtol=2e-3), "multi-step mismatch"

    print("KERNEL_OK")
</pallas_src>

<mosaic_0001>
module attributes {stable_mosaic.version = 11 : i64} {
  func.func @_expert_kernel_single(%arg0: i32, %arg1: memref<8x128xf32, #tpu.memory_space<vmem>>, %arg2: memref<128x128xf32, #tpu.memory_space<vmem>>, %arg3: memref<1x128xf32, #tpu.memory_space<vmem>>, %arg4: memref<128x128xf32, #tpu.memory_space<vmem>>, %arg5: memref<1x128xf32, #tpu.memory_space<vmem>>, %arg6: memref<8x128xf32, #tpu.memory_space<vmem>>) attributes {dimension_semantics = [#tpu.dimension_semantics<parallel>], iteration_bounds = array<i64: 2>, scalar_prefetch = 0 : i64, scratch_operands = 0 : i64, tpu.core_type = #tpu.core_type<tc>, window_params = [{transform_indices = @transform_0, window_bounds = array<i64: 8, 128>}, {pipeline_mode = #tpu.pipeline_mode<synchronous>, transform_indices = @transform_1, window_bounds = array<i64: 128, 128>}, {pipeline_mode = #tpu.pipeline_mode<synchronous>, transform_indices = @transform_2, window_bounds = array<i64: 1, 128>}, {pipeline_mode = #tpu.pipeline_mode<synchronous>, transform_indices = @transform_3, window_bounds = array<i64: 128, 128>}, {pipeline_mode = #tpu.pipeline_mode<synchronous>, transform_indices = @transform_4, window_bounds = array<i64: 1, 128>}, {transform_indices = @transform_5, window_bounds = array<i64: 8, 128>}]} {
    %c0 = arith.constant 0 : index
    %c0_0 = arith.constant 0 : index
    %0 = vector.load %arg1[%c0, %c0_0] : memref<8x128xf32, #tpu.memory_space<vmem>>, vector<8x128xf32>
    %c0_1 = arith.constant 0 : index
    %c0_2 = arith.constant 0 : index
    %1 = vector.load %arg2[%c0_1, %c0_2] : memref<128x128xf32, #tpu.memory_space<vmem>>, vector<128x128xf32>
    %cst = arith.constant dense<0.000000e+00> : vector<8x128xf32>
    %2 = tpu.matmul %0, %1, %cst {dimension_numbers = #tpu.dot_dimension_numbers<[1], [0], [0], [1], [0, 0, 1, 1], [], []>} : vector<8x128xf32>, vector<128x128xf32>, vector<8x128xf32> -> vector<8x128xf32>
    %c0_3 = arith.constant 0 : index
    %c0_4 = arith.constant 0 : index
    %3 = vector.load %arg3[%c0_3, %c0_4] : memref<1x128xf32, #tpu.memory_space<vmem>>, vector<1x128xf32>
    %4 = vector.broadcast %3 : vector<1x128xf32> to vector<8x128xf32>
    %5 = arith.addf %2, %4 : vector<8x128xf32>
    %6 = arith.mulf %5, %5 : vector<8x128xf32>
    %7 = arith.mulf %5, %6 : vector<8x128xf32>
    %cst_5 = arith.constant 4.471500e-02 : f32
    %8 = vector.broadcast %cst_5 : f32 to vector<8x128xf32>
    %9 = arith.mulf %8, %7 : vector<8x128xf32>
    %10 = arith.addf %5, %9 : vector<8x128xf32>
    %cst_6 = arith.constant 0.797884583 : f32
    %11 = vector.broadcast %cst_6 : f32 to vector<8x128xf32>
    %12 = arith.mulf %11, %10 : vector<8x128xf32>
    %13 = math.tanh %12 : vector<8x128xf32>
    %cst_7 = arith.constant 1.000000e+00 : f32
    %14 = vector.broadcast %cst_7 : f32 to vector<8x128xf32>
    %15 = arith.addf %14, %13 : vector<8x128xf32>
    %cst_8 = arith.constant 5.000000e-01 : f32
    %16 = vector.broadcast %cst_8 : f32 to vector<8x128xf32>
    %17 = arith.mulf %16, %15 : vector<8x128xf32>
    %18 = arith.mulf %5, %17 : vector<8x128xf32>
    %c0_9 = arith.constant 0 : index
    %c0_10 = arith.constant 0 : index
    %19 = vector.load %arg4[%c0_9, %c0_10] : memref<128x128xf32, #tpu.memory_space<vmem>>, vector<128x128xf32>
    %cst_11 = arith.constant dense<0.000000e+00> : vector<8x128xf32>
    %20 = tpu.matmul %18, %19, %cst_11 {dimension_numbers = #tpu.dot_dimension_numbers<[1], [0], [0], [1], [0, 0, 1, 1], [], []>} : vector<8x128xf32>, vector<128x128xf32>, vector<8x128xf32> -> vector<8x128xf32>
    %c0_12 = arith.constant 0 : index
    %c0_13 = arith.constant 0 : index
    %21 = vector.load %arg5[%c0_12, %c0_13] : memref<1x128xf32, #tpu.memory_space<vmem>>, vector<1x128xf32>
    %22 = vector.broadcast %21 : vector<1x128xf32> to vector<8x128xf32>
    %23 = arith.addf %20, %22 : vector<8x128xf32>
    %c0_14 = arith.constant 0 : index
    %c0_15 = arith.constant 0 : index
    %24 = vector.load %arg6[%c0_14, %c0_15] : memref<8x128xf32, #tpu.memory_space<vmem>>, vector<8x128xf32>
    tpu.vector_store %arg6[%c0_14, %c0_15], %23 {strides = array<i32>} : memref<8x128xf32, #tpu.memory_space<vmem>>, vector<8x128xf32>,
    return
  }
  func.func @transform_0(%arg0: i32) -> (i32, i32) {
    %c0_i32 = arith.constant 0 : i32
    %c0_i32_0 = arith.constant 0 : i32
    return %arg0, %c0_i32 : i32, i32
  }
  func.func @transform_1(%arg0: i32) -> (i32, i32) {
    %c0_i32 = arith.constant 0 : i32
    %c0_i32_0 = arith.constant 0 : i32
    %c0_i32_1 = arith.constant 0 : i32
    return %c0_i32, %c0_i32_0 : i32, i32
  }
  func.func @transform_2(%arg0: i32) -> (i32, i32) {
    %c0_i32 = arith.constant 0 : i32
    %c0_i32_0 = arith.constant 0 : i32
    %c0_i32_1 = arith.constant 0 : i32
    return %c0_i32, %c0_i32_0 : i32, i32
  }
  func.func @transform_3(%arg0: i32) -> (i32, i32) {
    %c0_i32 = arith.constant 0 : i32
    %c0_i32_0 = arith.constant 0 : i32
    %c0_i32_1 = arith.constant 0 : i32
    return %c0_i32, %c0_i32_0 : i32, i32
  }
  func.func @transform_4(%arg0: i32) -> (i32, i32) {
    %c0_i32 = arith.constant 0 : i32
    %c0_i32_0 = arith.constant 0 : i32
    %c0_i32_1 = arith.constant 0 : i32
    return %c0_i32, %c0_i32_0 : i32, i32
  }
  func.func @transform_5(%arg0: i32) -> (i32, i32) {
    %c0_i32 = arith.constant 0 : i32
    %c0_i32_0 = arith.constant 0 : i32
    return %arg0, %c0_i32 : i32, i32
  }
}

</mosaic_0001>

<llo_original>
// kernel: expert_apply.1
$region0: #{expert_apply.1}
  #allocation0 [shape = 'u32[]', space=smem, size = 0x4, offset = 0x4, fixed_abs, tag = 'smem constant byte address 0x4 - core index']
  #allocation1 [shape = 'u32[72,128]{1,0:T(1,128)}', space=vmem, size = 0x9000, scoped, tag = 'internal scratch']
  %s0 = inlined_call_operand.vmem [shape: f32[16,128], index: 0, kind: input, shape index: {}]
  %s1 = inlined_call_operand.hbm [shape: f32[128,128], index: 1, kind: input, shape index: {}]
  %s2 = inlined_call_operand.vmem [shape: f32[1,128], index: 2, kind: input, shape index: {}]
  %s3 = inlined_call_operand.hbm [shape: f32[128,128], index: 3, kind: input, shape index: {}]
  %s4 = inlined_call_operand.vmem [shape: f32[1,128], index: 4, kind: input, shape index: {}]
  %s5 = inlined_call_operand.vmem [shape: f32[16,128], index: 5, kind: output, shape index: {}]
  %s6 = sld [smem:[#allocation0]]
  $region61: #{expert_apply.1} parent=0
    _
  %s8 = ssub.s32 1, %s6
  %s9 = scalar_select 0, %s8, %s6
  $region1: #{expert_apply.1} parent=0
    #allocation2 [shape = 'u8[65536]{0}', space=vmem, size = 0x10000, scoped, tag = 'input window, operand 1, single buffered']
    #allocation3 [shape = 's32[2]{0}', space=sflag, size = 0x8, scoped, tag = 'scoped memory for expert_apply.1']
    #allocation4 [shape = 'u8[65536]{0}', space=vmem, size = 0x10000, scoped, tag = 'input window, operand 3, single buffered']
    #allocation5 [shape = 's32[1]{0}', space=sflag, size = 0x4, scoped, tag = 'scoped memory for expert_apply.1']
    %10 = vsyncpa [#allocation3], 0
    %11 = vsyncpa [#allocation5], 0
    loop: start=0, step=1, limit=4
    $region2: #{expert_apply.1} parent=1 // loop_pre_header
      _
    $region3: #{expert_apply.1} parent=1 // loop_header
      %s13 = sphi 0, %s17
      %p14 = scmp.ge.s32.totalorder %s13, 4
      %s23 = sphi 0, %s25
      %s26 = sphi 0, %s23
      %s27 = sphi 0, %s26
      %s43 = sphi 0, %s27
      %s47 = sphi 0, %s47
      %s49 = sphi 0, %s47
      %s50 = sphi 0, %s49
      %s64 = sphi 0, %s50
      %s68 = sphi 0, %s68
      %s70 = sphi 0, %s68
      %s71 = sphi 0, %s70
      %s85 = sphi 0, %s71
      %s89 = sphi 0, %s89
      %s91 = sphi 0, %s89
      %s92 = sphi 0, %s91
      %s106 = sphi 0, %s92
      %s110 = sphi 0, %s110
      %s112 = sphi 0, %s110
      %s113 = sphi 0, %s112
      %s127 = sphi 0, %s113
      %s133 = sphi 0, %s135
      %s136 = sphi 0, %s133
      %s137 = sphi 0, %s136
      %s153 = sphi 0, %s137
    $region4: #{expert_apply.1} parent=1 // loop_header_branch
      %16 = sbr.rel (%p14) target = $region8
    $region5: #{expert_apply.1} parent=1 // loop_body
      %s18 = ssub.s32 %s13, 1
      %s19 = ssub.s32 %s13, 2
      %s20 = sadd.s32 %s13, 1
      %s21 = ssub.s32 %s13, %s20
      %p22 = scmp.eq.s32.totalorder %s21, 0
      %s24 = sadd.s32 %s23, 1
      %s25 = scalar_select %p22, %s23, %s24
      %p28 = pneg %p22
      %p29 = scmp.eq.s32.totalorder %s13, 1
      %p30 = por %p28, %p29
      %p31 = scmp.ne.s32.totalorder %s23, %s26
      %p32 = scmp.eq.s32.totalorder %s13, 0
      %p33 = por %p31, %p32
      %p34 = scmp.ne.s32.totalorder %s23, %s26
      %p35 = scmp.eq.s32.totalorder %s18, 1
      %p36 = por %p34, %p35
      %p37 = scmp.ne.s32.totalorder %s26, %s27
      %p38 = scmp.eq.s32.totalorder %s18, 0
      %p39 = por %p37, %p38
      %p40 = scmp.ne.s32.totalorder %s26, %s27
      %p41 = scmp.eq.s32.totalorder %s19, 1
      %p42 = por %p40, %p41
      %p44 = scmp.ne.s32.totalorder %s27, %s43
      %p45 = scmp.eq.s32.totalorder %s19, 0
      %p46 = por %p44, %p45
      %s48 = sadd.s32 %s47, 1
      %p51 = scmp.eq.s32.totalorder %s13, 1
      %p52 = scmp.ne.s32.totalorder %s47, %s49
      %p53 = scmp.eq.s32.totalorder %s13, 0
      %p54 = por %p52, %p53
      %p55 = scmp.ne.s32.totalorder %s47, %s49
      %p56 = scmp.eq.s32.totalorder %s18, 1
      %p57 = por %p55, %p56
      %p58 = scmp.ne.s32.totalorder %s49, %s50
      %p59 = scmp.eq.s32.totalorder %s18, 0
      %p60 = por %p58, %p59
      %p61 = scmp.ne.s32.totalorder %s49, %s50
      %p62 = scmp.eq.s32.totalorder %s19, 1
      %p63 = por %p61, %p62
      %p65 = scmp.ne.s32.totalorder %s50, %s64
      %p66 = scmp.eq.s32.totalorder %s19, 0
      %p67 = por %p65, %p66
      %s69 = sadd.s32 %s68, 1
      %p72 = scmp.eq.s32.totalorder %s13, 1
      %p73 = scmp.ne.s32.totalorder %s68, %s70
      %p74 = scmp.eq.s32.totalorder %s13, 0
      %p75 = por %p73, %p74
      %p76 = scmp.ne.s32.totalorder %s68, %s70
      %p77 = scmp.eq.s32.totalorder %s18, 1
      %p78 = por %p76, %p77
      %p79 = scmp.ne.s32.totalorder %s70, %s71
      %p80 = scmp.eq.s32.totalorder %s18, 0
      %p81 = por %p79, %p80
      %p82 = scmp.ne.s32.totalorder %s70, %s71
      %p83 = scmp.eq.s32.totalorder %s19, 1
      %p84 = por %p82, %p83
      %p86 = scmp.ne.s32.totalorder %s71, %s85
      %p87 = scmp.eq.s32.totalorder %s19, 0
      %p88 = por %p86, %p87
      %s90 = sadd.s32 %s89, 1
      %p93 = scmp.eq.s32.totalorder %s13, 1
      %p94 = scmp.ne.s32.totalorder %s89, %s91
      %p95 = scmp.eq.s32.totalorder %s13, 0
      %p96 = por %p94, %p95
      %p97 = scmp.ne.s32.totalorder %s89, %s91
      %p98 = scmp.eq.s32.totalorder %s18, 1
      %p99 = por %p97, %p98
      %p100 = scmp.ne.s32.totalorder %s91, %s92
      %p101 = scmp.eq.s32.totalorder %s18, 0
      %p102 = por %p100, %p101
      %p103 = scmp.ne.s32.totalorder %s91, %s92
      %p104 = scmp.eq.s32.totalorder %s19, 1
      %p105 = por %p103, %p104
      %p107 = scmp.ne.s32.totalorder %s92, %s106
      %p108 = scmp.eq.s32.totalorder %s19, 0
      %p109 = por %p107, %p108
      %s111 = sadd.s32 %s110, 1
      %p114 = scmp.eq.s32.totalorder %s13, 1
      %p115 = scmp.ne.s32.totalorder %s110, %s112
      %p116 = scmp.eq.s32.totalorder %s13, 0
      %p117 = por %p115, %p116
      %p118 = scmp.ne.s32.totalorder %s110, %s112
      %p119 = scmp.eq.s32.totalorder %s18, 1
      %p120 = por %p118, %p119
      %p121 = scmp.ne.s32.totalorder %s112, %s113
      %p122 = scmp.eq.s32.totalorder %s18, 0
      %p123 = por %p121, %p122
      %p124 = scmp.ne.s32.totalorder %s112, %s113
      %p125 = scmp.eq.s32.totalorder %s19, 1
      %p126 = por %p124, %p125
      %p128 = scmp.ne.s32.totalorder %s113, %s127
      %p129 = scmp.eq.s32.totalorder %s19, 0
      %p130 = por %p128, %p129
      %s131 = ssub.s32 %s13, %s20
      %p132 = scmp.eq.s32.totalorder %s131, 0
      %s134 = sadd.s32 %s133, 1
      %s135 = scalar_select %p132, %s133, %s134
      %p138 = pneg %p132
      %p139 = scmp.eq.s32.totalorder %s13, 1
      %p140 = por %p138, %p139
      %p141 = scmp.ne.s32.totalorder %s133, %s136
      %p142 = scmp.eq.s32.totalorder %s13, 0
      %p143 = por %p141, %p142
      %p144 = scmp.ne.s32.totalorder %s133, %s136
      %p145 = scmp.eq.s32.totalorder %s18, 1
      %p146 = por %p144, %p145
      %p147 = scmp.ne.s32.totalorder %s136, %s137
      %p148 = scmp.eq.s32.totalorder %s18, 0
      %p149 = por %p147, %p148
      %p150 = scmp.ne.s32.totalorder %s136, %s137
      %p151 = scmp.eq.s32.totalorder %s19, 1
      %p152 = por %p150, %p151
      %p154 = scmp.ne.s32.totalorder %s137, %s153
      %p155 = scmp.eq.s32.totalorder %s19, 0
      %p156 = por %p154, %p155
      %p157 = scmp.le.s32.totalorder 1, %s13
      %p158 = scmp.lt.s32.totalorder %s13, 3
      %p159 = pnand %p157, %p158
      %p160 = pneg %p159
      // Predicated region
      $region9: #{expert_apply.1} parent=5 // pred_check
        _
      $region10: #{expert_apply.1} parent=5 // pred_check_branch
        %162 = sbr.rel (%p159) target = $region12
      $region11: #{expert_apply.1} parent=5 // pred_region
        %s163 = ssub.s32 %s13, 1
        // Predicated region
        $region13: #{expert_apply.1} parent=11 // pred_check
          %p164 = pneg %p60
        $region14: #{expert_apply.1} parent=11 // pred_check_branch
          %166 = sbr.rel (%p164) target = $region16
        $region15: #{expert_apply.1} parent=11 // pred_region
          %168 = vsyncadd [#allocation3], 0
          %s169 = sshll.u32 %s1, 4
          %s170 = int_to_ptr.hbm [resolvable:$true] %s169
          %s171 = sshll.u32 [#allocation2], 4
          %s172 = int_to_ptr.vmem [resolvable:$true] %s171
          %177 = dma.hbm_to_vmem [thread:$0]  %s170, 2048, %s172, [#allocation3], 128, 128, 8
        $region16: #{expert_apply.1} parent=11 // pred_fallthru
          _
        // Predicated region
        $region17: #{expert_apply.1} parent=11 // pred_check
          %p178 = pneg %p81
        $region18: #{expert_apply.1} parent=11 // pred_check_branch
          %180 = sbr.rel (%p178) target = $region20
        $region19: #{expert_apply.1} parent=11 // pred_region
          _
        $region20: #{expert_apply.1} parent=11 // pred_fallthru
          _
        // Predicated region
        $region21: #{expert_apply.1} parent=11 // pred_check
          %p181 = pneg %p102
        $region22: #{expert_apply.1} parent=11 // pred_check_branch
          %183 = sbr.rel (%p181) target = $region24
        $region23: #{expert_apply.1} parent=11 // pred_region
          %185 = vsyncadd [#allocation5], 0
          %s186 = sshll.u32 %s3, 4
          %s187 = int_to_ptr.hbm [resolvable:$true] %s186
          %s188 = sshll.u32 [#allocation4], 4
          %s189 = int_to_ptr.vmem [resolvable:$true] %s188
          %194 = dma.hbm_to_vmem [thread:$0]  %s187, 2048, %s189, [#allocation5], 128, 128, 8
        $region24: #{expert_apply.1} parent=11 // pred_fallthru
          _
        // Predicated region
        $region25: #{expert_apply.1} parent=11 // pred_check
          %p195 = pneg %p123
        $region26: #{expert_apply.1} parent=11 // pred_check_branch
          %197 = sbr.rel (%p195) target = $region28
        $region27: #{expert_apply.1} parent=11 // pred_region
          _
        $region28: #{expert_apply.1} parent=11 // pred_fallthru
          _
      $region12: #{expert_apply.1} parent=5 // pred_fallthru
        _
      %p198 = scmp.lt.s32.totalorder %s13, 2
      // Predicated region
      $region29: #{expert_apply.1} parent=5 // pred_check
        %p199 = pneg %p198
      $region30: #{expert_apply.1} parent=5 // pred_check_branch
        %201 = sbr.rel (%p199) target = $region32
      $region31: #{expert_apply.1} parent=5 // pred_region
        // Predicated region
        $region33: #{expert_apply.1} parent=31 // pred_check
          %p202 = pneg %p33
        $region34: #{expert_apply.1} parent=31 // pred_check_branch
          %204 = sbr.rel (%p202) target = $region36
        $region35: #{expert_apply.1} parent=31 // pred_region
          %p205 = scmp.lt.s32.totalorder %s13, 1
          %s206 = scalar_select %p205, %s13, 1
          %s207 = smul.addr %s206, 8
          %s208 = scalar_lea.vmem %s0, %s207
        $region36: #{expert_apply.1} parent=31 // pred_fallthru
          _
      $region32: #{expert_apply.1} parent=5 // pred_fallthru
        _
      %p209 = scmp.le.s32.totalorder 1, %s13
      %p210 = scmp.lt.s32.totalorder %s13, 3
      %p211 = pnand %p209, %p210
      %p212 = pneg %p211
      // Predicated region
      $region37: #{expert_apply.1} parent=5 // pred_check
        _
      $region38: #{expert_apply.1} parent=5 // pred_check_branch
        %214 = sbr.rel (%p211) target = $region40
      $region39: #{expert_apply.1} parent=5 // pred_region
        %s215 = ssub.s32 %s13, 1
        // Predicated region
        $region41: #{expert_apply.1} parent=39 // pred_check
          %p216 = pneg %p60
        $region42: #{expert_apply.1} parent=39 // pred_check_branch
          %218 = sbr.rel (%p216) target = $region44
        $region43: #{expert_apply.1} parent=39 // pred_region
          %220 = dma.done [#allocation3], 2048
        $region44: #{expert_apply.1} parent=39 // pred_fallthru
          _
        // Predicated region
        $region45: #{expert_apply.1} parent=39 // pred_check
          %p221 = pneg %p102
        $region46: #{expert_apply.1} parent=39 // pred_check_branch
          %223 = sbr.rel (%p221) target = $region48
        $region47: #{expert_apply.1} parent=39 // pred_region
          %225 = dma.done [#allocation5], 2048
        $region48: #{expert_apply.1} parent=39 // pred_fallthru
          _
        %p226 = scmp.lt.s32.totalorder %s18, 1
        %s227 = scalar_select %p226, %s18, 1
        %s228 = smul.addr %s227, 8
        %s229 = scalar_lea.vmem %s0, %s228
        %p230 = pneg %p39
        %p231 = pneg %p36
        %p232 = pneg %p60
        %p233 = pneg %p57
        %p234 = pneg %p81
        %p235 = pneg %p78
        %p236 = pneg %p102
        %p237 = pneg %p99
        %p238 = pneg %p123
        %p239 = pneg %p120
        %p240 = pneg %p149
        %p241 = pneg %p146
        %p242 = scmp.lt.s32.totalorder %s18, 1
        %s243 = scalar_select %p242, %s18, 1
        %s244 = smul.addr %s243, 8
        %s245 = scalar_lea.vmem %s5, %s244
        %p246 = scmp.lt.s32.totalorder %s18, 1
        %s247 = scalar_select %p246, %s18, 1
        %s248 = smul.addr %s247, 8
        %s249 = scalar_lea.vmem %s0, %s248
        %p250 = scmp.lt.s32.totalorder %s18, 1
        %s251 = scalar_select %p250, %s18, 1
        %s252 = smul.addr %s251, 8
        %s253 = scalar_lea.vmem %s5, %s252
        %v254 = vld [vmem:[%s249] sm:$0xff]
        %v255 = vld [vmem:[#allocation2] sm:$0xff]
        %v256 = vld [vmem:[#allocation2 + $0x8] sm:$0xff]
        %v257 = vld [vmem:[#allocation2 + $0x10] sm:$0xff]
        %v258 = vld [vmem:[#allocation2 + $0x18] sm:$0xff]
        %v259 = vld [vmem:[#allocation2 + $0x20] sm:$0xff]
        %v260 = vld [vmem:[#allocation2 + $0x28] sm:$0xff]
        %v261 = vld [vmem:[#allocation2 + $0x30] sm:$0xff]
        %v262 = vld [vmem:[#allocation2 + $0x38] sm:$0xff]
        %v263 = vld [vmem:[#allocation2 + $0x40] sm:$0xff]
        %v264 = vld [vmem:[#allocation2 + $0x48] sm:$0xff]
        %v265 = vld [vmem:[#allocation2 + $0x50] sm:$0xff]
        %v266 = vld [vmem:[#allocation2 + $0x58] sm:$0xff]
        %v267 = vld [vmem:[#allocation2 + $0x60] sm:$0xff]
        %v268 = vld [vmem:[#allocation2 + $0x68] sm:$0xff]
        %v269 = vld [vmem:[#allocation2 + $0x70] sm:$0xff]
        %v270 = vld [vmem:[#allocation2 + $0x78] sm:$0xff]
        %v271 = vld [vmem:[%s2] sm:$0x1]
        %v273 = vperm.slane %v271, 0
        %275 = vmatpush.msra.mxu0 %v270
        %276 = vmatpush.msra.mxu0 %v269
        %277 = vmatpush.msra.mxu0 %v268
        %278 = vmatpush.msra.mxu0 %v267
        %279 = vmatpush.msra.mxu0 %v266
        %280 = vmatpush.msra.mxu0 %v265
        %281 = vmatpush.msra.mxu0 %v264
        %282 = vmatpush.msra.mxu0 %v263
        %283 = vmatpush.msra.mxu0 %v262
        %284 = vmatpush.msra.mxu0 %v261
        %285 = vmatpush.msra.mxu0 %v260
        %286 = vmatpush.msra.mxu0 %v259
        %287 = vmatpush.msra.mxu0 %v258
        %288 = vmatpush.msra.mxu0 %v257
        %289 = vmatpush.msra.mxu0 %v256
        %290 = vmatpush.msra.mxu0 %v255
        %291 = vmatmul.f32.gmra.mxu0 %v254
        %v292 = vpop.f32.mrf.mxu0
        %v293 = vadd.f32 %v273, %v292
        %294 = vdwg.mxu0
        %v295 = vmul.f32 %v293, %v293
        %v296 = vmul.f32 %v293, %v295
        %v297 = vmul.f32 %v296, 0.044715
        %v298 = vadd.f32 %v293, %v297
        %v299 = vmul.f32 %v298, 0.7978846
        %v300 = vtanh.pop %v299
        %v301 = vadd.f32 %v300, 1.0
        %v302 = vmul.f32 %v301, 0.5
        %v303 = vmul.f32 %v293, %v302
        %v304 = vld [vmem:[#allocation4] sm:$0xff]
        %v305 = vld [vmem:[#allocation4 + $0x8] sm:$0xff]
        %v306 = vld [vmem:[#allocation4 + $0x10] sm:$0xff]
        %v307 = vld [vmem:[#allocation4 + $0x18] sm:$0xff]
        %v308 = vld [vmem:[#allocation4 + $0x20] sm:$0xff]
        %v309 = vld [vmem:[#allocation4 + $0x28] sm:$0xff]
        %v310 = vld [vmem:[#allocation4 + $0x30] sm:$0xff]
        %v311 = vld [vmem:[#allocation4 + $0x38] sm:$0xff]
        %v312 = vld [vmem:[#allocation4 + $0x40] sm:$0xff]
        %v313 = vld [vmem:[#allocation4 + $0x48] sm:$0xff]
        %v314 = vld [vmem:[#allocation4 + $0x50] sm:$0xff]
        %v315 = vld [vmem:[#allocation4 + $0x58] sm:$0xff]
        %v316 = vld [vmem:[#allocation4 + $0x60] sm:$0xff]
        %v317 = vld [vmem:[#allocation4 + $0x68] sm:$0xff]
        %v318 = vld [vmem:[#allocation4 + $0x70] sm:$0xff]
        %v319 = vld [vmem:[#allocation4 + $0x78] sm:$0xff]
        %v320 = vld [vmem:[%s4] sm:$0x1]
        %v322 = vperm.slane %v320, 0
        %324 = vmatpush.msra.mxu0 %v319
        %325 = vmatpush.msra.mxu0 %v318
        %326 = vmatpush.msra.mxu0 %v317
        %327 = vmatpush.msra.mxu0 %v316
        %328 = vmatpush.msra.mxu0 %v315
        %329 = vmatpush.msra.mxu0 %v314
        %330 = vmatpush.msra.mxu0 %v313
        %331 = vmatpush.msra.mxu0 %v312
        %332 = vmatpush.msra.mxu0 %v311
        %333 = vmatpush.msra.mxu0 %v310
        %334 = vmatpush.msra.mxu0 %v309
        %335 = vmatpush.msra.mxu0 %v308
        %336 = vmatpush.msra.mxu0 %v307
        %337 = vmatpush.msra.mxu0 %v306
        %338 = vmatpush.msra.mxu0 %v305
        %339 = vmatpush.msra.mxu0 %v304
        %340 = vmatmul.f32.gmra.mxu0 %v303
        %v341 = vpop.f32.mrf.mxu0
        %v342 = vadd.f32 %v322, %v341
        %343 = vdwg.mxu0
        %344 = vst [vmem:[%s253] sm:$0xff] %v342
        %p345 = scmp.lt.s32.totalorder %s18, 1
        %s346 = scalar_select %p345, %s18, 1
        %s347 = smul.addr %s346, 8
        %s348 = scalar_lea.vmem %s5, %s347
        // Predicated region
        $region49: #{expert_apply.1} parent=39 // pred_check
          %p349 = pneg %p146
        $region50: #{expert_apply.1} parent=39 // pred_check_branch
          %351 = sbr.rel (%p349) target = $region52
        $region51: #{expert_apply.1} parent=39 // pred_region
          _
        $region52: #{expert_apply.1} parent=39 // pred_fallthru
          _
      $region40: #{expert_apply.1} parent=5 // pred_fallthru
        _
      %p352 = scmp.le.s32.totalorder 2, %s13
      // Predicated region
      $region53: #{expert_apply.1} parent=5 // pred_check
        %p353 = pneg %p352
      $region54: #{expert_apply.1} parent=5 // pred_check_branch
        %355 = sbr.rel (%p353) target = $region56
      $region55: #{expert_apply.1} parent=5 // pred_region
        %s356 = ssub.s32 %s13, 2
        // Predicated region
        $region57: #{expert_apply.1} parent=55 // pred_check
          %p357 = pneg %p152
        $region58: #{expert_apply.1} parent=55 // pred_check_branch
          %359 = sbr.rel (%p357) target = $region60
        $region59: #{expert_apply.1} parent=55 // pred_region
          %p360 = scmp.lt.s32.totalorder %s19, 1
          %s361 = scalar_select %p360, %s19, 1
          %s362 = smul.addr %s361, 8
          %s363 = scalar_lea.vmem %s5, %s362
        $region60: #{expert_apply.1} parent=55 // pred_fallthru
          _
      $region56: #{expert_apply.1} parent=5 // pred_fallthru
        _
    $region6: #{expert_apply.1} parent=1 // loop_footer
      %s17 = sadd.s32 1, %s13
    $region7: #{expert_apply.1} parent=1 // loop_footer_branch
      %12 = sbr.rel target = $region3
    $region8: #{expert_apply.1} parent=1 // loop_exit
      _
    %364 = vsyncpa [#allocation3], 1
    %s365 = scalar_lea.sflag [#allocation3], 1
    %366 = vsyncpa %s365, 1
    %367 = vsyncpa [#allocation5], 1

</llo_original>
